<compile_context>
chip_gen: v7x
topology: tpu7x:2x2x1
jax: 0.10.0
libtpu: 0.0.40
codegen_flags: <defaults>
</compile_context>

<pallas_src>
import jax
import jax.numpy as jnp
from jax import lax
from jax.experimental import pallas as pl
from jax.experimental.pallas import tpu as pltpu


_EPS = 1e-12  # matches torch.nn.functional.normalize default eps


def _sim_kernel(e_c_ref, e_qt_ref, out_ref, dots_ref, ssq_ref):
    """One (tc, tb, th) step of tau * <normalize(e_c), normalize(e_q)>.

    e_c_ref : (tc, tb, th) native dtype     e_qt_ref: (tb, th) f32 (tau*e_q_n)
    out_ref : (tc, tb) f32                  dots/ssq: (tc, tb) f32 accumulators
    """
    hi = pl.program_id(2)

    @pl.when(hi == 0)
    def _():
        dots_ref[...] = jnp.zeros_like(dots_ref)
        ssq_ref[...] = jnp.zeros_like(ssq_ref)

    e_c = e_c_ref[...].astype(jnp.float32)        # upcast in-vreg (bf16 -> f32)
    e_qt = e_qt_ref[...]                          # already tau * normalize(e_q)

    # TODO(synk): if v7x profiles show the vld slot binding with bf16 inputs,
    # fuse these two reductions into one pass over 128-lane chunks.
    dots_ref[...] += jnp.sum(e_c * e_qt[None, :, :], axis=-1)
    ssq_ref[...] += jnp.sum(e_c * e_c, axis=-1)

    @pl.when(hi == pl.num_programs(2) - 1)
    def _():
        # 1 / max(||x||, eps) == min(rsqrt(||x||^2), 1/eps)  (rsqrt -> EUP).
        scale = jnp.minimum(lax.rsqrt(ssq_ref[...]), 1.0 / _EPS)
        out_ref[...] = (dots_ref[...] * scale).astype(out_ref.dtype)


def _round_up(x, m):
    return ((x + m - 1) // m) * m


def _vmem_budget_and_limit():
    """Generation-aware VMEM working-set budget + scoped limit."""
    cap = 64 * 1024 * 1024  # conservative fallback (v7x-sized per-TC VMEM)
    try:
        info = pltpu.get_tpu_info()
        cap_attr = getattr(info, "vmem_capacity_bytes", None)
        if cap_attr:
            cap = int(cap_attr)
    except Exception:
        pass
    # v5e/v6e (128 MiB physical): budget 56 MiB, limit 72 MiB.
    # v7x     ( 64 MiB physical): budget 32 MiB, limit 48 MiB.
    budget = min(cap // 2, 56 * 1024 * 1024)
    limit = min(budget + 16 * 1024 * 1024, (cap * 3) // 4)
    return budget, limit, cap


def _select_tiles(B, C, H, c_itemsize, budget, block_b, block_c, block_h):
    """Pick (tc, tb, th): (8,128)-legal tiles grown up to the VMEM budget."""

    def tile_bytes(tc, tb, th):
        th_p = _round_up(th, 128)          # lane axis pads to 128 in VMEM
        tb_sub = _round_up(tb, 8)
        tb_lane = _round_up(tb, 128)
        tc_sub = _round_up(tc, 8)
        ec = 2 * tc * tb_sub * th_p * c_itemsize   # double-buffered e_c tile
        eq = 2 * tb_sub * th_p * 4                 # double-buffered e_q tile
        out = 2 * tc_sub * tb_lane * 4             # double-buffered out tile
        acc = 2 * tc_sub * tb_lane * 4             # dots + ssq accumulators
        return ec + eq + out + acc

    tc_min = C if C <= 8 else 8
    tb_min = B if B <= 128 else 128

    # H chunk: full H when it fits with minimal (tc, tb); otherwise the largest
    # multiple of 128 that divides H exactly (the reduction axis must never see
    # a ragged / garbage tail).
    if block_h is not None:
        th = block_h
    else:
        th = H
        if H > 128 and H % 128 == 0 and tile_bytes(tc_min, tb_min, H) > budget:
            n128 = H // 128
            th = 128
            for k in range(n128, 0, -1):
                if n128 % k == 0 and tile_bytes(tc_min, tb_min, k * 128) <= budget:
                    th = k * 128
                    break
        # TODO(synk): mask the ragged H tail in-kernel so H % 128 != 0 can also
        # be split; until then such shapes use a single full-H block.

    # Grow tc in multiples of 8 (biggest lever: fewer grid steps, bigger DMAs).
    if block_c is not None:
        tc = block_c
    else:
        tc = tc_min
        while tc < C and tile_bytes(min(C, tc + 8), tb_min, th) <= budget:
            tc = min(C, tc + 8)

    # Then grow tb in multiples of 128 (keeps output stores lane-dense).
    if block_b is not None:
        tb = block_b
    else:
        tb = tb_min
        while tb < B and tile_bytes(tc, min(B, tb + 128), th) <= budget:
            tb = min(B, tb + 128)

    return tc, tb, th, tile_bytes(tc, tb, th)


def similarity_classifier_forward(e_c, e_q, tau, n_class, hidden_dim,
                                  *, block_b=None, block_c=None, block_h=None):
    """Pallas forward of SimilarityClassifier.

    e_c: (n_class * B, hidden_dim), e_q: (B, hidden_dim), tau: scalar.
    Returns tau * cosine similarities with shape (B, n_class)
    (or (B,) when n_class == 1, matching torch's .squeeze(-1)).
    """
    B = e_q.shape[0]
    C = n_class
    H = hidden_dim

    # Native-dtype streaming of the big operand; reshape is metadata-only.
    e_c3 = e_c.reshape(C, B, H)

    # Hoisted e_q normalization with tau folded in (tiny relative to e_c).
    e_qf = e_q.astype(jnp.float32)
    q_ssq = jnp.sum(e_qf * e_qf, axis=-1, keepdims=True)
    e_qt = (e_qf * jnp.minimum(lax.rsqrt(q_ssq), 1.0 / _EPS)
            * jnp.asarray(tau, jnp.float32))

    budget, vmem_limit, cap = _vmem_budget_and_limit()
    tc, tb, th, need = _select_tiles(
        B, C, H, jnp.dtype(e_c3.dtype).itemsize, budget,
        block_b, block_c, block_h)
    vmem_limit = int(min(max(vmem_limit, need + (8 << 20)), (cap * 3) // 4))

    # Grid: B outer, C middle, H innermost (reduction). e_q's block index only
    # depends on (bi, hi) so it stays resident across all C tiles.
    grid = (pl.cdiv(B, tb), pl.cdiv(C, tc), pl.cdiv(H, th))

    out_cb = pl.pallas_call(
        _sim_kernel,
        out_shape=jax.ShapeDtypeStruct((C, B), jnp.float32),
        grid=grid,
        in_specs=[
            pl.BlockSpec((tc, tb, th), lambda bi, ci, hi: (ci, bi, hi)),  # e_c
            pl.BlockSpec((tb, th), lambda bi, ci, hi: (bi, hi)),          # e_q
        ],
        out_specs=pl.BlockSpec((tc, tb), lambda bi, ci, hi: (ci, bi)),    # (C,B)
        scratch_shapes=[pltpu.VMEM((tc, tb), jnp.float32),   # dot accumulator
                        pltpu.VMEM((tc, tb), jnp.float32)],  # ||e_c||^2 accum
        compiler_params=pltpu.CompilerParams(
            dimension_semantics=("parallel", "parallel", "arbitrary"),
            vmem_limit_bytes=vmem_limit,
        ),
    )(e_c3, e_qt)

    s_qc = out_cb.T                            # (B, n_class), like torch .T
    if C == 1:                                 # replicate torch .squeeze(-1)
        s_qc = s_qc[..., 0]
    return s_qc


def _reference(e_c, e_q, tau, n_class, hidden_dim):
    """Faithful JAX port of the torch forward (normalize, then dot)."""
    B = e_q.shape[0]
    ecf = e_c.astype(jnp.float32)
    eqf = e_q.astype(jnp.float32)
    ecn = ecf / jnp.maximum(jnp.linalg.norm(ecf, axis=-1, keepdims=True), _EPS)
    ecn = ecn.reshape(n_class, B, hidden_dim)
    eqn = eqf / jnp.maximum(jnp.linalg.norm(eqf, axis=-1, keepdims=True), _EPS)
    s = jnp.sum(ecn * eqn[None], axis=-1).T
    s = jnp.asarray(tau, jnp.float32) * s
    if n_class == 1:
        s = s[..., 0]
    return s


if __name__ == "__main__":
    # Small shapes consistent with the module: n_class=4, n_query=2, hidden=32.
    n_class, n_query, hidden_dim = 4, 2, 32
    B = n_class * n_query  # 8 query embeddings

    key = jax.random.PRNGKey(0)
    k1, k2, k3, k4 = jax.random.split(key, 4)
    e_c = jax.random.normal(k1, (n_class * B, hidden_dim), dtype=jnp.float32)
    e_q = jax.random.normal(k2, (B, hidden_dim), dtype=jnp.float32)
    tau = jnp.float32(0.01)  # deterministic init: 0.01 * ones(1), as in __init__

    out = similarity_classifier_forward(e_c, e_q, tau, n_class, hidden_dim)
    out = jax.block_until_ready(out)
    ref = _reference(e_c, e_q, tau, n_class, hidden_dim)
    assert out.shape == (B, n_class)
    assert jnp.allclose(out, ref, atol=1e-5, rtol=1e-3)

    # Tiled grid over B (grid=(2,1,1)) with 128-lane output tiles.
    B2 = 256
    e_c2 = jax.random.normal(k3, (n_class * B2, hidden_dim), dtype=jnp.float32)
    e_q2 = jax.random.normal(k2, (B2, hidden_dim), dtype=jnp.float32)
    out2 = similarity_classifier_forward(e_c2, e_q2, tau, n_class, hidden_dim,
                                         block_b=128)
    out2 = jax.block_until_ready(out2)
    ref2 = _reference(e_c2, e_q2, tau, n_class, hidden_dim)
    assert out2.shape == (B2, n_class)
    assert jnp.allclose(out2, ref2, atol=1e-5, rtol=1e-3)

    # Ragged C tiling (C=12, tc=8 -> grid=(1,2,1)) with no jnp.pad: the OOB
    # rows of the last C block are computed on garbage and dropped at writeback.
    C3 = 12
    e_c3 = jax.random.normal(k3, (C3 * B, hidden_dim), dtype=jnp.float32)
    out3 = similarity_classifier_forward(e_c3, e_q, tau, C3, hidden_dim,
                                         block_b=B, block_c=8)
    out3 = jax.block_until_ready(out3)
    ref3 = _reference(e_c3, e_q, tau, C3, hidden_dim)
    assert out3.shape == (B, C3)
    assert jnp.allclose(out3, ref3, atol=1e-5, rtol=1e-3)

    # H-split reduction axis with f32 accumulators (H=256, th=128 -> nh=2).
    H4 = 256
    e_c4 = jax.random.normal(k4, (n_class * B, H4), dtype=jnp.float32)
    e_q4 = jax.random.normal(k2, (B, H4), dtype=jnp.float32)
    out4 = similarity_classifier_forward(e_c4, e_q4, tau, n_class, H4,
                                         block_h=128)
    out4 = jax.block_until_ready(out4)
    ref4 = _reference(e_c4, e_q4, tau, n_class, H4)
    assert out4.shape == (B, n_class)
    assert jnp.allclose(out4, ref4, atol=1e-5, rtol=1e-3)

    # Native bf16 e_c on the wire (halved HBM traffic), upcast in-kernel.
    e_c_bf = e_c.astype(jnp.bfloat16)
    out5 = similarity_classifier_forward(e_c_bf, e_q, tau, n_class, hidden_dim)
    out5 = jax.block_until_ready(out5)
    ref5 = _reference(e_c_bf, e_q, tau, n_class, hidden_dim)
    assert out5.shape == (B, n_class)
    assert jnp.allclose(out5, ref5, atol=1e-5, rtol=1e-3)

    print("KERNEL_OK")
</pallas_src>

<mosaic_0001>
module attributes {stable_mosaic.version = 11 : i64} {
  func.func @_sim_kernel(%arg0: i32, %arg1: i32, %arg2: i32, %arg3: memref<4x8x32xf32, #tpu.memory_space<vmem>>, %arg4: memref<8x32xf32, #tpu.memory_space<vmem>>, %arg5: memref<4x8xf32, #tpu.memory_space<vmem>>, %arg6: memref<4x8xf32, #tpu.memory_space<vmem>>, %arg7: memref<4x8xf32, #tpu.memory_space<vmem>>) attributes {dimension_semantics = [#tpu.dimension_semantics<parallel>, #tpu.dimension_semantics<parallel>, #tpu.dimension_semantics<arbitrary>], iteration_bounds = array<i64: 1, 1, 1>, scalar_prefetch = 0 : i64, scratch_operands = 2 : i64, tpu.core_type = #tpu.core_type<tc>, window_params = [{transform_indices = @transform_0, window_bounds = array<i64: 4, 8, 32>}, {transform_indices = @transform_1, window_bounds = array<i64: 8, 32>}, {transform_indices = @transform_2, window_bounds = array<i64: 4, 8>}]} {
    %c0_i32 = arith.constant 0 : i32
    %0 = arith.cmpi eq, %arg2, %c0_i32 : i32
    %1 = arith.extui %0 : i1 to i32
    %c0_i32_0 = arith.constant 0 : i32
    %2 = arith.cmpi ne, %1, %c0_i32_0 : i32
    scf.if %2 {
      %cst_16 = arith.constant 0.000000e+00 : f32
      %20 = vector.broadcast %cst_16 : f32 to vector<4x8xf32>
      %c0_17 = arith.constant 0 : index
      %c0_18 = arith.constant 0 : index
      %21 = vector.load %arg6[%c0_17, %c0_18] : memref<4x8xf32, #tpu.memory_space<vmem>>, vector<4x8xf32>
      tpu.vector_store %arg6[%c0_17, %c0_18], %20 {strides = array<i32>} : memref<4x8xf32, #tpu.memory_space<vmem>>, vector<4x8xf32>,
      %cst_19 = arith.constant 0.000000e+00 : f32
      %22 = vector.broadcast %cst_19 : f32 to vector<4x8xf32>
      %c0_20 = arith.constant 0 : index
      %c0_21 = arith.constant 0 : index
      %23 = vector.load %arg7[%c0_20, %c0_21] : memref<4x8xf32, #tpu.memory_space<vmem>>, vector<4x8xf32>
      tpu.vector_store %arg7[%c0_20, %c0_21], %22 {strides = array<i32>} : memref<4x8xf32, #tpu.memory_space<vmem>>, vector<4x8xf32>,
    } else {
    }
    %c0 = arith.constant 0 : index
    %c0_1 = arith.constant 0 : index
    %c0_2 = arith.constant 0 : index
    %3 = vector.load %arg3[%c0, %c0_1, %c0_2] : memref<4x8x32xf32, #tpu.memory_space<vmem>>, vector<4x8x32xf32>
    %c0_3 = arith.constant 0 : index
    %c0_4 = arith.constant 0 : index
    %4 = vector.load %arg4[%c0_3, %c0_4] : memref<8x32xf32, #tpu.memory_space<vmem>>, vector<8x32xf32>
    %c0_5 = arith.constant 0 : index
    %c0_6 = arith.constant 0 : index
    %5 = vector.load %arg6[%c0_5, %c0_6] : memref<4x8xf32, #tpu.memory_space<vmem>>, vector<4x8xf32>
    %6 = vector.shape_cast %4 : vector<8x32xf32> to vector<1x8x32xf32>
    %7 = vector.broadcast %6 : vector<1x8x32xf32> to vector<4x8x32xf32>
    %8 = arith.mulf %3, %7 : vector<4x8x32xf32>
    %cst = arith.constant dense<0.000000e+00> : vector<4x8xf32>
    %9 = vector.multi_reduction <add>, %8, %cst [2] : vector<4x8x32xf32> to vector<4x8xf32>
    %10 = arith.addf %5, %9 : vector<4x8xf32>
    %c0_7 = arith.constant 0 : index
    %c0_8 = arith.constant 0 : index
    %11 = vector.load %arg6[%c0_7, %c0_8] : memref<4x8xf32, #tpu.memory_space<vmem>>, vector<4x8xf32>
    tpu.vector_store %arg6[%c0_7, %c0_8], %10 {strides = array<i32>} : memref<4x8xf32, #tpu.memory_space<vmem>>, vector<4x8xf32>,
    %c0_9 = arith.constant 0 : index
    %c0_10 = arith.constant 0 : index
    %12 = vector.load %arg7[%c0_9, %c0_10] : memref<4x8xf32, #tpu.memory_space<vmem>>, vector<4x8xf32>
    %13 = arith.mulf %3, %3 : vector<4x8x32xf32>
    %cst_11 = arith.constant dense<0.000000e+00> : vector<4x8xf32>
    %14 = vector.multi_reduction <add>, %13, %cst_11 [2] : vector<4x8x32xf32> to vector<4x8xf32>
    %15 = arith.addf %12, %14 : vector<4x8xf32>
    %c0_12 = arith.constant 0 : index
    %c0_13 = arith.constant 0 : index
    %16 = vector.load %arg7[%c0_12, %c0_13] : memref<4x8xf32, #tpu.memory_space<vmem>>, vector<4x8xf32>
    tpu.vector_store %arg7[%c0_12, %c0_13], %15 {strides = array<i32>} : memref<4x8xf32, #tpu.memory_space<vmem>>, vector<4x8xf32>,
    %c0_i32_14 = arith.constant 0 : i32
    %17 = arith.cmpi eq, %arg2, %c0_i32_14 : i32
    %18 = arith.extui %17 : i1 to i32
    %c0_i32_15 = arith.constant 0 : i32
    %19 = arith.cmpi ne, %18, %c0_i32_15 : i32
    scf.if %19 {
      %c0_16 = arith.constant 0 : index
      %c0_17 = arith.constant 0 : index
      %20 = vector.load %arg7[%c0_16, %c0_17] : memref<4x8xf32, #tpu.memory_space<vmem>>, vector<4x8xf32>
      %21 = math.rsqrt %20 : vector<4x8xf32>
      %cst_18 = arith.constant 9.99999995E+11 : f32
      %22 = vector.broadcast %cst_18 : f32 to vector<4x8xf32>
      %23 = arith.minimumf %21, %22 : vector<4x8xf32>
      %c0_19 = arith.constant 0 : index
      %c0_20 = arith.constant 0 : index
      %24 = vector.load %arg6[%c0_19, %c0_20] : memref<4x8xf32, #tpu.memory_space<vmem>>, vector<4x8xf32>
      %25 = arith.mulf %24, %23 : vector<4x8xf32>
      %c0_21 = arith.constant 0 : index
      %c0_22 = arith.constant 0 : index
      %26 = vector.load %arg5[%c0_21, %c0_22] : memref<4x8xf32, #tpu.memory_space<vmem>>, vector<4x8xf32>
      tpu.vector_store %arg5[%c0_21, %c0_22], %25 {strides = array<i32>} : memref<4x8xf32, #tpu.memory_space<vmem>>, vector<4x8xf32>,
    } else {
    }
    return
  }
  func.func @transform_0(%arg0: i32, %arg1: i32, %arg2: i32) -> (i32, i32, i32) {
    %c0_i32 = arith.constant 0 : i32
    return %arg1, %arg0, %arg2 : i32, i32, i32
  }
  func.func @transform_1(%arg0: i32, %arg1: i32, %arg2: i32) -> (i32, i32) {
    %c0_i32 = arith.constant 0 : i32
    return %arg0, %arg2 : i32, i32
  }
  func.func @transform_2(%arg0: i32, %arg1: i32, %arg2: i32) -> (i32, i32) {
    %c0_i32 = arith.constant 0 : i32
    return %arg1, %arg0 : i32, i32
  }
}

</mosaic_0001>

<llo_original>
// kernel: tpu_custom_call.1
$region0: #{tpu_custom_call.1}
  #allocation0 [shape = 'u32[]', space=smem, size = 0x4, offset = 0x4, fixed_abs, tag = 'smem constant byte address 0x4 - core index']
  #allocation1 [shape = 'u32[144,128]{1,0:T(1,128)}', space=vmem, size = 0x12000, scoped, tag = 'internal scratch']
  #allocation2 [shape = 'f32[4,8]{1,0:T(4,128)}', space=vmem, size = 0x800, scoped, tag = 'scratch operand']
  #allocation3 [shape = 'f32[4,8]{1,0:T(4,128)}', space=vmem, size = 0x800, scoped, tag = 'scratch operand']
  %s0 = inlined_call_operand.hbm [shape: f32[4,8,32], index: 0, kind: input, shape index: {}]
  %s1 = inlined_call_operand.hbm [shape: f32[8,32], index: 1, kind: input, shape index: {}]
  %s2 = inlined_call_operand.hbm [shape: f32[4,8], index: 2, kind: output, shape index: {}]
  %s3 = sld [smem:[#allocation0]]
  $region34: #{tpu_custom_call.1} parent=0
    _
  %s5 = ssub.s32 1, %s3
  %s6 = scalar_select 0, %s5, %s3
  $region1: #{tpu_custom_call.1} parent=0
    #allocation4 [shape = 'u8[16384]{0}', space=vmem, size = 0x4000, scoped, tag = 'input window, operand 0, single buffered']
    #allocation5 [shape = 's32[1]{0}', space=sflag, size = 0x4, scoped, tag = 'scoped memory for tpu_custom_call.1']
    #allocation6 [shape = 's32[1]{0}', space=sflag, size = 0x4, scoped, tag = 'scoped memory for tpu_custom_call.1']
    #allocation7 [shape = 'u8[4096]{0}', space=vmem, size = 0x1000, scoped, tag = 'input window, operand 1, single buffered']
    #allocation8 [shape = 's32[1]{0}', space=sflag, size = 0x4, scoped, tag = 'scoped memory for tpu_custom_call.1']
    #allocation9 [shape = 'u8[2048]{0}', space=vmem, size = 0x800, scoped, tag = 'output window, operand 0, single buffered']
    %7 = vsyncpa [#allocation5], 0
    %8 = vsyncpa [#allocation8], 0
    %9 = vsyncpa [#allocation6], 0
    // Predicated region
    $region2: #{tpu_custom_call.1} parent=1 // pred_check
      _
    $region3: #{tpu_custom_call.1} parent=1 // pred_check_branch
      %11 = sbr.rel (0) target = $region5
    $region4: #{tpu_custom_call.1} parent=1 // pred_region
      %s13 = ssub.s32 512, 512
      %14 = vsyncadd [#allocation5], %s13
      %s15 = sshll.u32 [#allocation4], 4
      %s16 = int_to_ptr.vmem [resolvable:$true] %s15
      %21 = dma.hbm_to_vmem [thread:$0]  %s0, 512, %s16, [#allocation5], 128, 128, 8
    $region5: #{tpu_custom_call.1} parent=1 // pred_fallthru
      _
    // Predicated region
    $region6: #{tpu_custom_call.1} parent=1 // pred_check
      _
    $region7: #{tpu_custom_call.1} parent=1 // pred_check_branch
      %23 = sbr.rel (0) target = $region9
    $region8: #{tpu_custom_call.1} parent=1 // pred_region
      %s25 = ssub.s32 128, 128
      %26 = vsyncadd [#allocation8], %s25
      %s28 = sshll.u32 [#allocation7], 4
      %s29 = int_to_ptr.vmem [resolvable:$true] %s28
      %31 = dma.hbm_to_vmem [thread:$0]  %s1, 128, %s29, [#allocation8]
    $region9: #{tpu_custom_call.1} parent=1 // pred_fallthru
      _
    // Predicated region
    $region10: #{tpu_custom_call.1} parent=1 // pred_check
      _
    $region11: #{tpu_custom_call.1} parent=1 // pred_check_branch
      %33 = sbr.rel (0) target = $region13
    $region12: #{tpu_custom_call.1} parent=1 // pred_region
      %34 = dma.done [#allocation5], 512
    $region13: #{tpu_custom_call.1} parent=1 // pred_fallthru
      _
    // Predicated region
    $region14: #{tpu_custom_call.1} parent=1 // pred_check
      _
    $region15: #{tpu_custom_call.1} parent=1 // pred_check_branch
      %36 = sbr.rel (0) target = $region17
    $region16: #{tpu_custom_call.1} parent=1 // pred_region
      %37 = dma.done [#allocation8], 128
    $region17: #{tpu_custom_call.1} parent=1 // pred_fallthru
      _
    %p38 = scmp.eq.s32.totalorder 0, 0
    // Predicated region
    $region18: #{tpu_custom_call.1} parent=1 // pred_check
      %p39 = pneg %p38
    $region19: #{tpu_custom_call.1} parent=1 // pred_check_branch
      %41 = sbr.rel (%p39) target = $region21
    $region20: #{tpu_custom_call.1} parent=1 // pred_region
      %vm42 = vcmask 60416
      %43 = vst.msk [vmem:[#allocation2] sm:$0xf] %vm42, 0.0
      %44 = vst.msk [vmem:[#allocation3] sm:$0xf] %vm42, 0.0
    $region21: #{tpu_custom_call.1} parent=1 // pred_fallthru
      _
    %v45 = vld [vmem:[#allocation4] sm:$0xff]
    %v46 = vld [vmem:[#allocation4 + $0x8] sm:$0xff]
    %v47 = vld [vmem:[#allocation4 + $0x10] sm:$0xff]
    %v48 = vld [vmem:[#allocation4 + $0x18] sm:$0xff]
    %v49 = vld [vmem:[#allocation7] sm:$0xff]
    %v50 = vld [vmem:[#allocation2] sm:$0xf]
    %v51 = vmul.f32 %v45, %v49
    %v52 = vmul.f32 %v46, %v49
    %v53 = vmul.f32 %v47, %v49
    %v54 = vmul.f32 %v48, %v49
    %vm55 = vcmask 261120
    %v56 = vsel %vm55, %v51, 0.0
    %57 = vadd.xlane.f32.xlu0 %v56
    %v58 = vpop.xlane.xlu0 %57
    %v59 = vsel %vm55, %v52, 0.0
    %60 = vadd.xlane.f32.xlu0 %v59
    %v61 = vpop.xlane.xlu0 %60
    %v62 = vsel %vm55, %v53, 0.0
    %63 = vadd.xlane.f32.xlu0 %v62
    %v64 = vpop.xlane.xlu0 %63
    %v65 = vsel %vm55, %v54, 0.0
    %66 = vadd.xlane.f32.xlu0 %v65
    %v67 = vpop.xlane.xlu0 %66
    %v72 = vlaneseq
    %v73 = vand.u32 %v72, 127
    %v74 = vlaneseq
    %v75 = vshrl.u32 %v74, 7
    %v76 = vsub.s32 %v73, %v75
    %v77 = vrot.slane %v58, %v76
    %v78 = vlaneseq
    %v79 = vshrl.u32 %v78, 7
    %v80 = vsub.s32 %v73, %v79
    %v81 = vrot.slane %v61, %v80
    %v82 = vlaneseq
    %v83 = vshrl.u32 %v82, 7
    %v84 = vsub.s32 %v73, %v83
    %v85 = vrot.slane %v64, %v84
    %v86 = vlaneseq
    %v87 = vshrl.u32 %v86, 7
    %v88 = vsub.s32 %v73, %v87
    %v89 = vrot.slane %v67, %v88
    %vm90 = vcmask 1041409
    %v91 = vsel %vm90, %v81, %v77
    %vm92 = vcmask 1042434
    %v93 = vsel %vm92, %v85, %v91
    %vm94 = vcmask 1043459
    %v95 = vsel %vm94, %v89, %v93
    %v97 = vadd.f32 %v50, %v95
    %vm98 = vcmask 60416
    %99 = vst.msk [vmem:[#allocation2] sm:$0xf] %vm98, %v97
    %v100 = vld [vmem:[#allocation3] sm:$0xf]
    %v101 = vmul.f32 %v45, %v45
    %v102 = vmul.f32 %v46, %v46
    %v103 = vmul.f32 %v47, %v47
    %v104 = vmul.f32 %v48, %v48
    %v105 = vsel %vm55, %v101, 0.0
    %106 = vadd.xlane.f32.xlu0 %v105
    %v107 = vpop.xlane.xlu0 %106
    %v108 = vsel %vm55, %v102, 0.0
    %109 = vadd.xlane.f32.xlu0 %v108
    %v110 = vpop.xlane.xlu0 %109
    %v111 = vsel %vm55, %v103, 0.0
    %112 = vadd.xlane.f32.xlu0 %v111
    %v113 = vpop.xlane.xlu0 %112
    %v114 = vsel %vm55, %v104, 0.0
    %115 = vadd.xlane.f32.xlu0 %v114
    %v116 = vpop.xlane.xlu0 %115
    %v121 = vlaneseq
    %v122 = vshrl.u32 %v121, 7
    %v123 = vsub.s32 %v73, %v122
    %v124 = vrot.slane %v107, %v123
    %v125 = vlaneseq
    %v126 = vshrl.u32 %v125, 7
    %v127 = vsub.s32 %v73, %v126
    %v128 = vrot.slane %v110, %v127
    %v129 = vlaneseq
    %v130 = vshrl.u32 %v129, 7
    %v131 = vsub.s32 %v73, %v130
    %v132 = vrot.slane %v113, %v131
    %v133 = vlaneseq
    %v134 = vshrl.u32 %v133, 7
    %v135 = vsub.s32 %v73, %v134
    %v136 = vrot.slane %v116, %v135
    %v137 = vsel %vm90, %v128, %v124
    %v138 = vsel %vm92, %v132, %v137
    %v139 = vsel %vm94, %v136, %v138
    %v141 = vadd.f32 %v100, %v139
    %142 = vst.msk [vmem:[#allocation3] sm:$0xf] %vm98, %v141
    // Predicated region
    $region22: #{tpu_custom_call.1} parent=1 // pred_check
      %p143 = pneg %p38
    $region23: #{tpu_custom_call.1} parent=1 // pred_check_branch
      %145 = sbr.rel (%p143) target = $region25
    $region24: #{tpu_custom_call.1} parent=1 // pred_region
      %v146 = vld [vmem:[#allocation3] sm:$0xf]
      %v147 = vrsqrt.pop %v146
      %v148 = vmin.f32 %v147, 1e+12
      %v149 = vld [vmem:[#allocation2] sm:$0xf]
      %v150 = vmul.f32 %v149, %v148
      %151 = vst.msk [vmem:[#allocation9] sm:$0xf] %vm98, %v150
    $region25: #{tpu_custom_call.1} parent=1 // pred_fallthru
      _
    // Predicated region
    $region26: #{tpu_custom_call.1} parent=1 // pred_check
      _
    $region27: #{tpu_custom_call.1} parent=1 // pred_check_branch
      %153 = sbr.rel (0) target = $region29
    $region28: #{tpu_custom_call.1} parent=1 // pred_region
      %s155 = ssub.s32 64, 64
      %156 = vsyncadd [#allocation6], %s155
      %s158 = sshll.u32 [#allocation9], 4
      %s159 = int_to_ptr.vmem [resolvable:$true] %s158
      %161 = dma.vmem_to_hbm [thread:$0]  %s159, 64, %s2, [#allocation6]
    $region29: #{tpu_custom_call.1} parent=1 // pred_fallthru
      _
    // Predicated region
    $region30: #{tpu_custom_call.1} parent=1 // pred_check
      _
    $region31: #{tpu_custom_call.1} parent=1 // pred_check_branch
      %163 = sbr.rel (0) target = $region33
    $region32: #{tpu_custom_call.1} parent=1 // pred_region
      %164 = dma.done [#allocation6], 64
    $region33: #{tpu_custom_call.1} parent=1 // pred_fallthru
      _
    %165 = vsyncpa [#allocation5], 1
    %166 = vsyncpa [#allocation8], 1
    %167 = vsyncpa [#allocation6], 1

</llo_original>
